<compile_context>
chip_gen: v6e
topology: v6e:2x2x1
jax: 0.10.0
libtpu: 0.0.40
codegen_flags: <defaults>
</compile_context>

<pallas_src>
import numpy as np
import jax
import jax.numpy as jnp
from jax.experimental import pallas as pl
from jax.experimental.pallas import tpu as pltpu

# ----------------------------------------------------------------------------
# Synthetic config (mirrors MODEL_PARAMS / CONFIG of the reference repo)
# ----------------------------------------------------------------------------
CONFIG = {"batch_size": 2}
MODEL_PARAMS = {
    "CBT_resolution": 8,
    "intermediate_resolution": 32,
    "intermediate_channel": 32,
    "dropout_prob": 0.1,
    "Modality1": {"n_features": 8 * 7 // 2},                  # 28
    "Modality3": {"N_ROIs": 16, "n_features": 16 * 15 // 2},  # 120
}

BATCH_SIZE = CONFIG["batch_size"]
CBT_RES = MODEL_PARAMS["CBT_resolution"]
ROI3 = MODEL_PARAMS["Modality3"]["N_ROIs"]
F3 = MODEL_PARAMS["Modality3"]["n_features"]          # 120
F1 = MODEL_PARAMS["Modality1"]["n_features"]          # 28
INTER = MODEL_PARAMS["intermediate_resolution"]       # 32
IC = MODEL_PARAMS["intermediate_channel"]             # 32

LANES = 128
_VMEM = pl.BlockSpec(memory_space=pltpu.MemorySpace.VMEM)

# ----------------------------------------------------------------------------
# Weight-slab (slab A) row layout: 128 lanes wide, every band starts on a
# multiple-of-8 row.  Unused lanes/rows are zero (this is what provides the
# "free" zero-padding of s_cbt to 128 lanes).
# ----------------------------------------------------------------------------
ROW_BIAS = 0       # 8 rows, one bias vector per row (see R_* below)
ROW_W33 = 8        # (120, 32)   conv33
ROW_W2 = 128       # (32, 28)    conv2
ROW_W1 = 160       # (28, 28)    conv1
ROW_RZ = 192       # (28, n*32+28) [presummed linear1 blocks | conv34 weight]
ROW_WL2 = 224      # (32, 28)    linear2
ROW_SCBT = 256     # (28, 64)    CBT scatter matrix (zero-padded to 128 lanes)
ROW_W35 = 288      # (28, 32)    conv35
ROW_W36 = 320      # (32, 120)   conv36
A_ROWS = 352

(R_B33, R_B2, R_B1, R_BL1, R_BL2, R_B34, R_B35, R_B36) = range(8)


# ----------------------------------------------------------------------------
# Constant scatter matrices for antiVectorize:
#   (vec @ S).reshape(m, m) == symmetric matrix, strict upper triangle filled
#   row-major from vec, mirrored, zero diagonal.
# ----------------------------------------------------------------------------
def _make_scatter_matrix(m):
    n = m * (m - 1) // 2
    iu_r, iu_c = np.triu_indices(m, k=1)
    s = np.zeros((n, m * m), dtype=np.float32)
    s[np.arange(n), iu_r * m + iu_c] = 1.0
    s[np.arange(n), iu_c * m + iu_r] = 1.0
    return jnp.asarray(s)


S_ROI3 = _make_scatter_matrix(ROI3)      # (120, 256)  -> slab B as-is
S_CBT = _make_scatter_matrix(CBT_RES)    # (28, 64)


# ----------------------------------------------------------------------------
# Parameter init (deterministic, synthetic)
# ----------------------------------------------------------------------------
def init_params(key):
    dims = {
        "conv33": (F3, INTER), "conv2": (INTER, F1), "conv1": (F1, F1),
        "conv34": (F1, F1), "conv35": (F1, INTER), "conv36": (INTER, F3),
        "linear1": (BATCH_SIZE * F1, IC), "linear2": (IC, F1),
    }
    params = {}
    for i, (name, (din, dout)) in enumerate(dims.items()):
        kw, kb = jax.random.split(jax.random.fold_in(key, i))
        scale = 1.0 / jnp.sqrt(jnp.float32(din))
        params[name] = {
            "w": jax.random.normal(kw, (din, dout), jnp.float32) * scale,
            "b": jax.random.normal(kb, (1, dout), jnp.float32) * 0.01,
        }
    return params


# ----------------------------------------------------------------------------
# Pack all weights / biases / scatter constants into two VMEM slabs (run once,
# outside the hot path).  n_rows is the (static) number of rows of x.
# ----------------------------------------------------------------------------
def pack_params(params, n_rows):
    if n_rows > BATCH_SIZE:
        raise ValueError(f"Input tensor has more than {BATCH_SIZE} rows!")
    p = params
    reps = (BATCH_SIZE + n_rows - 1) // n_rows   # repeat_interleave factor

    # Fold repeat_to_batch_size + view(-1) + linear1 into per-source-row
    # pre-summed weight blocks:  z_flat @ W_l1 == sum_s z[s] @ W'_s  where
    # W'_s = sum_{r : r // reps == s} W_l1[r*F1:(r+1)*F1].
    wl1 = p["linear1"]["w"]                      # (BATCH_SIZE*F1, IC)
    wprime = []
    for s in range(n_rows):
        acc = jnp.zeros((F1, IC), jnp.float32)
        for r in range(BATCH_SIZE):
            if r // reps == s:
                acc = acc + wl1[r * F1:(r + 1) * F1, :]
        wprime.append(acc)
    # Fused z-consumer RHS: [W'_0 | ... | W'_{n-1} | conv34 weight]
    rz = jnp.concatenate(wprime + [p["conv34"]["w"]], axis=1)  # (28, n*32+28)

    a = jnp.zeros((A_ROWS, LANES), jnp.float32)

    def put(slab, row, mat):
        r, c = mat.shape
        return slab.at[row:row + r, 0:c].set(mat.astype(jnp.float32))

    # bias band (one (1, dout) row each)
    a = put(a, R_B33, p["conv33"]["b"])
    a = put(a, R_B2, p["conv2"]["b"])
    a = put(a, R_B1, p["conv1"]["b"])
    a = put(a, R_BL1, p["linear1"]["b"])
    a = put(a, R_BL2, p["linear2"]["b"])
    a = put(a, R_B34, p["conv34"]["b"])
    a = put(a, R_B35, p["conv35"]["b"])
    a = put(a, R_B36, p["conv36"]["b"])
    # weight bands
    a = put(a, ROW_W33, p["conv33"]["w"])
    a = put(a, ROW_W2, p["conv2"]["w"])
    a = put(a, ROW_W1, p["conv1"]["w"])
    a = put(a, ROW_RZ, rz)
    a = put(a, ROW_WL2, p["linear2"]["w"])
    a = put(a, ROW_SCBT, S_CBT)
    a = put(a, ROW_W35, p["conv35"]["w"])
    a = put(a, ROW_W36, p["conv36"]["w"])

    slab_b = S_ROI3                               # (120, 256), already aligned
    return a, slab_b


# ----------------------------------------------------------------------------
# Single fused Pallas kernel
# ----------------------------------------------------------------------------
def _make_fused_kernel(n):
    rz_w = n * IC + F1   # width of the fused z-consumer RHS

    def kernel(x_ref, a_ref, b_ref, out_ref):
        f32 = jnp.float32
        x = x_ref[...]                                    # (n, 120)

        # ---- unpack slabs (static slices: zero-cost views + plain loads) ----
        bias = a_ref[ROW_BIAS:ROW_BIAS + 8, :]            # (8, 128)
        b33 = bias[R_B33:R_B33 + 1, 0:INTER]
        b2 = bias[R_B2:R_B2 + 1, 0:F1]
        b1 = bias[R_B1:R_B1 + 1, 0:F1]
        bl1 = bias[R_BL1:R_BL1 + 1, 0:IC]
        bl2 = bias[R_BL2:R_BL2 + 1, 0:F1]
        b34 = bias[R_B34:R_B34 + 1, 0:F1]
        b35 = bias[R_B35:R_B35 + 1, 0:INTER]
        b36 = bias[R_B36:R_B36 + 1, 0:F3]

        w33 = a_ref[ROW_W33:ROW_W33 + F3, 0:INTER]        # (120, 32)
        w2 = a_ref[ROW_W2:ROW_W2 + INTER, 0:F1]           # (32, 28)
        w1 = a_ref[ROW_W1:ROW_W1 + F1, 0:F1]              # (28, 28)
        rz = a_ref[ROW_RZ:ROW_RZ + F1, 0:rz_w]            # (28, rz_w)
        wl2 = a_ref[ROW_WL2:ROW_WL2 + IC, 0:F1]           # (32, 28)
        s_cbt = a_ref[ROW_SCBT:ROW_SCBT + F1, 0:LANES]    # (28, 128) 0-padded
        w35 = a_ref[ROW_W35:ROW_W35 + F1, 0:INTER]        # (28, 32)
        w36 = a_ref[ROW_W36:ROW_W36 + INTER, 0:F3]        # (32, 120)
        s_roi = b_ref[...]                                # (120, 256)

        dot = lambda l, r: jnp.dot(l, r, preferred_element_type=f32)
        sig = jax.nn.sigmoid
        leaky = lambda v: jnp.where(v >= 0.0, v, 0.05 * v)   # LeakyReLU(0.05)

        # ---- encoder (dropout is identity at inference) ----
        h = sig(dot(x, w33) + b33)                        # (n, 32)
        h = sig(dot(h, w2) + b2)                          # (n, 28)
        z = sig(dot(h, w1) + b1)                          # (n, 28)

        # ---- fused z-consumer matmul: [linear1 blocks | conv34] ----
        zc = dot(z, rz)                                   # (n, n*32+28)

        # batch-based normalizer (repeat/flatten folded into pre-summed W')
        i1_pre = bl1
        for s in range(n):
            i1_pre = i1_pre + zc[s:s + 1, s * IC:(s + 1) * IC]
        i1 = sig(i1_pre)                                  # (1, 32)
        i2 = sig(dot(i1, wl2) + bl2)                      # (1, 28)

        # decoder (conv34 output already inside zc)
        g = leaky(zc[:, n * IC:n * IC + F1] + b34)        # (n, 28)
        g = leaky(dot(g, w35) + b35)                      # (n, 32)
        y = leaky(dot(g, w36) + b36)                      # (n, 120)

        # ---- antiVectorize: shared-RHS scatter matmuls ----
        xy_mat = dot(jnp.concatenate([x, y], axis=0), s_roi)     # (2n, 256)
        zc_mat = dot(jnp.concatenate([z, i2], axis=0), s_cbt)    # (n+1, 128)
        i1_row = jnp.concatenate(
            [i1, jnp.zeros((1, LANES - IC), f32)], axis=1)        # (1, 128)

        # ---- single lane-dense output slab (last dim 256) ----
        out_ref[0:2 * n, :] = xy_mat                  # rows 0:n xmat, n:2n ymat
        out_ref[2 * n:3 * n + 1, 0:LANES] = zc_mat    # rows 2n:3n zmat, 3n cbt
        out_ref[3 * n + 1:3 * n + 2, 0:LANES] = i1_row

    return kernel


def _fused_call(slab_a, slab_b, x):
    n = x.shape[0]
    if n > BATCH_SIZE:
        raise ValueError(f"Input tensor has more than {BATCH_SIZE} rows!")
    rz_w = n * IC + F1
    out_shape = jax.ShapeDtypeStruct((3 * n + 2, 256), jnp.float32)

    flops = 2 * (n * F3 * INTER + n * INTER * F1 + n * F1 * F1
                 + n * F1 * rz_w + IC * F1 + (n + 1) * F1 * CBT_RES * CBT_RES
                 + n * F1 * INTER + n * INTER * F3
                 + 2 * n * F3 * ROI3 * ROI3)
    transcendentals = n * (INTER + 2 * F1) + IC + F1
    bytes_accessed = 4 * (x.size + slab_a.size + slab_b.size
                          + (3 * n + 2) * 256)

    return pl.pallas_call(
        _make_fused_kernel(n),
        out_shape=out_shape,
        in_specs=[_VMEM, _VMEM, _VMEM],
        out_specs=_VMEM,
        cost_estimate=pl.CostEstimate(
            flops=flops,
            transcendentals=transcendentals,
            bytes_accessed=bytes_accessed),
    )(x, slab_a, slab_b)


# ----------------------------------------------------------------------------
# Forward pass
# ----------------------------------------------------------------------------
@jax.jit
def model3_forward(slab_a, slab_b, x, edge_index):
    del edge_index  # self-loop-only graph: GCN propagation is identity
    n = x.shape[0]
    out = _fused_call(slab_a, slab_b, x)
    x_matrix = out[0:n, :].reshape(n, ROI3, ROI3)
    y_matrix = out[n:2 * n, :].reshape(n, ROI3, ROI3)
    z_matrix = out[2 * n:3 * n, :CBT_RES * CBT_RES].reshape(n, CBT_RES, CBT_RES)
    cbt_matrix = out[3 * n, :CBT_RES * CBT_RES].reshape(CBT_RES, CBT_RES)
    i1 = out[3 * n + 1, :IC]          # matches torch Linear on 1-D input
    return x_matrix, z_matrix, y_matrix, i1, cbt_matrix


if __name__ == "__main__":
    key = jax.random.PRNGKey(0)
    pkey, xkey = jax.random.split(key)
    params = init_params(pkey)

    # x: [1, roi3*(roi3-1)/2] node features of a 1-node graph
    x = jax.random.uniform(xkey, (1, F3), jnp.float32)
    # edge_index: self-loop only (unused)
    edge_index = jnp.zeros((2, 1), jnp.int32)

    slab_a, slab_b = pack_params(params, n_rows=x.shape[0])

    outs = model3_forward(slab_a, slab_b, x, edge_index)
    outs = jax.block_until_ready(outs)

    x_m, z_m, y_m, i1, cbt_m = outs
    assert x_m.shape == (1, ROI3, ROI3)
    assert z_m.shape == (1, CBT_RES, CBT_RES)
    assert y_m.shape == (1, ROI3, ROI3)
    assert i1.shape == (IC,)
    assert cbt_m.shape == (CBT_RES, CBT_RES)
    # sanity: antiVectorized outputs must be symmetric with zero diagonal
    assert bool(jnp.allclose(cbt_m, cbt_m.T))
    assert bool(jnp.allclose(jnp.diagonal(cbt_m), 0.0))
    assert bool(jnp.allclose(x_m[0], x_m[0].T))
    print("KERNEL_OK")
</pallas_src>

<mosaic_0001>
module attributes {stable_mosaic.version = 11 : i64} {
  func.func @kernel(%arg0: memref<1x120xf32, #tpu.memory_space<vmem>>, %arg1: memref<352x128xf32, #tpu.memory_space<vmem>>, %arg2: memref<120x256xf32, #tpu.memory_space<vmem>>, %arg3: memref<5x256xf32, #tpu.memory_space<vmem>>) attributes {dimension_semantics = [], scalar_prefetch = 0 : i64, scratch_operands = 0 : i64, tpu.core_type = #tpu.core_type<tc>} {
    %c0 = arith.constant 0 : index
    %c0_0 = arith.constant 0 : index
    %0 = vector.load %arg0[%c0, %c0_0] : memref<1x120xf32, #tpu.memory_space<vmem>>, vector<1x120xf32>
    %c0_1 = arith.constant 0 : index
    %c0_2 = arith.constant 0 : index
    %1 = vector.load %arg1[%c0_1, %c0_2] : memref<352x128xf32, #tpu.memory_space<vmem>>, vector<8x128xf32>
    %2 = vector.extract_strided_slice %1 {offsets = [0, 0], sizes = [1, 32], strides = [1, 1]} : vector<8x128xf32> to vector<1x32xf32>
    %3 = vector.extract_strided_slice %1 {offsets = [1, 0], sizes = [1, 28], strides = [1, 1]} : vector<8x128xf32> to vector<1x28xf32>
    %4 = vector.extract_strided_slice %1 {offsets = [2, 0], sizes = [1, 28], strides = [1, 1]} : vector<8x128xf32> to vector<1x28xf32>
    %5 = vector.extract_strided_slice %1 {offsets = [3, 0], sizes = [1, 32], strides = [1, 1]} : vector<8x128xf32> to vector<1x32xf32>
    %6 = vector.extract_strided_slice %1 {offsets = [4, 0], sizes = [1, 28], strides = [1, 1]} : vector<8x128xf32> to vector<1x28xf32>
    %7 = vector.extract_strided_slice %1 {offsets = [5, 0], sizes = [1, 28], strides = [1, 1]} : vector<8x128xf32> to vector<1x28xf32>
    %8 = vector.extract_strided_slice %1 {offsets = [6, 0], sizes = [1, 32], strides = [1, 1]} : vector<8x128xf32> to vector<1x32xf32>
    %9 = vector.extract_strided_slice %1 {offsets = [7, 0], sizes = [1, 120], strides = [1, 1]} : vector<8x128xf32> to vector<1x120xf32>
    %c8 = arith.constant 8 : index
    %c0_3 = arith.constant 0 : index
    %10 = vector.load %arg1[%c8, %c0_3] : memref<352x128xf32, #tpu.memory_space<vmem>>, vector<120x32xf32>
    %c128 = arith.constant 128 : index
    %c0_4 = arith.constant 0 : index
    %11 = vector.load %arg1[%c128, %c0_4] : memref<352x128xf32, #tpu.memory_space<vmem>>, vector<32x28xf32>
    %c160 = arith.constant 160 : index
    %c0_5 = arith.constant 0 : index
    %12 = vector.load %arg1[%c160, %c0_5] : memref<352x128xf32, #tpu.memory_space<vmem>>, vector<28x28xf32>
    %c192 = arith.constant 192 : index
    %c0_6 = arith.constant 0 : index
    %13 = vector.load %arg1[%c192, %c0_6] : memref<352x128xf32, #tpu.memory_space<vmem>>, vector<28x60xf32>
    %c224 = arith.constant 224 : index
    %c0_7 = arith.constant 0 : index
    %14 = vector.load %arg1[%c224, %c0_7] : memref<352x128xf32, #tpu.memory_space<vmem>>, vector<32x28xf32>
    %c256 = arith.constant 256 : index
    %c0_8 = arith.constant 0 : index
    %15 = vector.load %arg1[%c256, %c0_8] : memref<352x128xf32, #tpu.memory_space<vmem>>, vector<28x128xf32>
    %c288 = arith.constant 288 : index
    %c0_9 = arith.constant 0 : index
    %16 = vector.load %arg1[%c288, %c0_9] : memref<352x128xf32, #tpu.memory_space<vmem>>, vector<28x32xf32>
    %c320 = arith.constant 320 : index
    %c0_10 = arith.constant 0 : index
    %17 = vector.load %arg1[%c320, %c0_10] : memref<352x128xf32, #tpu.memory_space<vmem>>, vector<32x120xf32>
    %c0_11 = arith.constant 0 : index
    %c0_12 = arith.constant 0 : index
    %18 = vector.load %arg2[%c0_11, %c0_12] : memref<120x256xf32, #tpu.memory_space<vmem>>, vector<120x256xf32>
    %cst = arith.constant dense<0.000000e+00> : vector<1x32xf32>
    %19 = tpu.matmul %0, %10, %cst {dimension_numbers = #tpu.dot_dimension_numbers<[1], [0], [0], [1], [0, 0, 1, 1], [], []>} : vector<1x120xf32>, vector<120x32xf32>, vector<1x32xf32> -> vector<1x32xf32>
    %20 = arith.addf %19, %2 : vector<1x32xf32>
    %21 = arith.negf %20 : vector<1x32xf32>
    %22 = math.exp %21 : vector<1x32xf32>
    %cst_13 = arith.constant 1.000000e+00 : f32
    %23 = vector.broadcast %cst_13 : f32 to vector<1x32xf32>
    %24 = arith.addf %23, %22 : vector<1x32xf32>
    %25 = arith.divf %23, %24 : vector<1x32xf32>
    %cst_14 = arith.constant dense<0.000000e+00> : vector<1x28xf32>
    %26 = tpu.matmul %25, %11, %cst_14 {dimension_numbers = #tpu.dot_dimension_numbers<[1], [0], [0], [1], [0, 0, 1, 1], [], []>} : vector<1x32xf32>, vector<32x28xf32>, vector<1x28xf32> -> vector<1x28xf32>
    %27 = arith.addf %26, %3 : vector<1x28xf32>
    %28 = arith.negf %27 : vector<1x28xf32>
    %29 = math.exp %28 : vector<1x28xf32>
    %cst_15 = arith.constant 1.000000e+00 : f32
    %30 = vector.broadcast %cst_15 : f32 to vector<1x28xf32>
    %31 = arith.addf %30, %29 : vector<1x28xf32>
    %32 = arith.divf %30, %31 : vector<1x28xf32>
    %cst_16 = arith.constant dense<0.000000e+00> : vector<1x28xf32>
    %33 = tpu.matmul %32, %12, %cst_16 {dimension_numbers = #tpu.dot_dimension_numbers<[1], [0], [0], [1], [0, 0, 1, 1], [], []>} : vector<1x28xf32>, vector<28x28xf32>, vector<1x28xf32> -> vector<1x28xf32>
    %34 = arith.addf %33, %4 : vector<1x28xf32>
    %35 = arith.negf %34 : vector<1x28xf32>
    %36 = math.exp %35 : vector<1x28xf32>
    %cst_17 = arith.constant 1.000000e+00 : f32
    %37 = vector.broadcast %cst_17 : f32 to vector<1x28xf32>
    %38 = arith.addf %37, %36 : vector<1x28xf32>
    %39 = arith.divf %37, %38 : vector<1x28xf32>
    %cst_18 = arith.constant dense<0.000000e+00> : vector<1x60xf32>
    %40 = tpu.matmul %39, %13, %cst_18 {dimension_numbers = #tpu.dot_dimension_numbers<[1], [0], [0], [1], [0, 0, 1, 1], [], []>} : vector<1x28xf32>, vector<28x60xf32>, vector<1x60xf32> -> vector<1x60xf32>
    %41 = vector.extract_strided_slice %40 {offsets = [0, 0], sizes = [1, 32], strides = [1, 1]} : vector<1x60xf32> to vector<1x32xf32>
    %42 = arith.addf %5, %41 : vector<1x32xf32>
    %43 = arith.negf %42 : vector<1x32xf32>
    %44 = math.exp %43 : vector<1x32xf32>
    %cst_19 = arith.constant 1.000000e+00 : f32
    %45 = vector.broadcast %cst_19 : f32 to vector<1x32xf32>
    %46 = arith.addf %45, %44 : vector<1x32xf32>
    %47 = arith.divf %45, %46 : vector<1x32xf32>
    %cst_20 = arith.constant dense<0.000000e+00> : vector<1x28xf32>
    %48 = tpu.matmul %47, %14, %cst_20 {dimension_numbers = #tpu.dot_dimension_numbers<[1], [0], [0], [1], [0, 0, 1, 1], [], []>} : vector<1x32xf32>, vector<32x28xf32>, vector<1x28xf32> -> vector<1x28xf32>
    %49 = arith.addf %48, %6 : vector<1x28xf32>
    %50 = arith.negf %49 : vector<1x28xf32>
    %51 = math.exp %50 : vector<1x28xf32>
    %cst_21 = arith.constant 1.000000e+00 : f32
    %52 = vector.broadcast %cst_21 : f32 to vector<1x28xf32>
    %53 = arith.addf %52, %51 : vector<1x28xf32>
    %54 = arith.divf %52, %53 : vector<1x28xf32>
    %55 = vector.extract_strided_slice %40 {offsets = [0, 32], sizes = [1, 28], strides = [1, 1]} : vector<1x60xf32> to vector<1x28xf32>
    %56 = arith.addf %55, %7 : vector<1x28xf32>
    %cst_22 = arith.constant 0.000000e+00 : f32
    %57 = vector.broadcast %cst_22 : f32 to vector<1x28xf32>
    %58 = arith.cmpf oge, %56, %57 : vector<1x28xf32>
    %cst_23 = arith.constant 5.000000e-02 : f32
    %59 = vector.broadcast %cst_23 : f32 to vector<1x28xf32>
    %60 = arith.mulf %59, %56 : vector<1x28xf32>
    %61 = arith.select %58, %56, %60 : vector<1x28xi1>, vector<1x28xf32>
    %cst_24 = arith.constant dense<0.000000e+00> : vector<1x32xf32>
    %62 = tpu.matmul %61, %16, %cst_24 {dimension_numbers = #tpu.dot_dimension_numbers<[1], [0], [0], [1], [0, 0, 1, 1], [], []>} : vector<1x28xf32>, vector<28x32xf32>, vector<1x32xf32> -> vector<1x32xf32>
    %63 = arith.addf %62, %8 : vector<1x32xf32>
    %cst_25 = arith.constant 0.000000e+00 : f32
    %64 = vector.broadcast %cst_25 : f32 to vector<1x32xf32>
    %65 = arith.cmpf oge, %63, %64 : vector<1x32xf32>
    %cst_26 = arith.constant 5.000000e-02 : f32
    %66 = vector.broadcast %cst_26 : f32 to vector<1x32xf32>
    %67 = arith.mulf %66, %63 : vector<1x32xf32>
    %68 = arith.select %65, %63, %67 : vector<1x32xi1>, vector<1x32xf32>
    %cst_27 = arith.constant dense<0.000000e+00> : vector<1x120xf32>
    %69 = tpu.matmul %68, %17, %cst_27 {dimension_numbers = #tpu.dot_dimension_numbers<[1], [0], [0], [1], [0, 0, 1, 1], [], []>} : vector<1x32xf32>, vector<32x120xf32>, vector<1x120xf32> -> vector<1x120xf32>
    %70 = arith.addf %69, %9 : vector<1x120xf32>
    %cst_28 = arith.constant 0.000000e+00 : f32
    %71 = vector.broadcast %cst_28 : f32 to vector<1x120xf32>
    %72 = arith.cmpf oge, %70, %71 : vector<1x120xf32>
    %cst_29 = arith.constant 5.000000e-02 : f32
    %73 = vector.broadcast %cst_29 : f32 to vector<1x120xf32>
    %74 = arith.mulf %73, %70 : vector<1x120xf32>
    %75 = arith.select %72, %70, %74 : vector<1x120xi1>, vector<1x120xf32>
    %76 = tpu.concatenate %0, %75 in 0 : vector<1x120xf32>, vector<1x120xf32> -> vector<2x120xf32>
    %cst_30 = arith.constant dense<0.000000e+00> : vector<2x256xf32>
    %77 = tpu.matmul %76, %18, %cst_30 {dimension_numbers = #tpu.dot_dimension_numbers<[1], [0], [0], [1], [0, 0, 1, 1], [], []>} : vector<2x120xf32>, vector<120x256xf32>, vector<2x256xf32> -> vector<2x256xf32>
    %78 = tpu.concatenate %39, %54 in 0 : vector<1x28xf32>, vector<1x28xf32> -> vector<2x28xf32>
    %cst_31 = arith.constant dense<0.000000e+00> : vector<2x128xf32>
    %79 = tpu.matmul %78, %15, %cst_31 {dimension_numbers = #tpu.dot_dimension_numbers<[1], [0], [0], [1], [0, 0, 1, 1], [], []>} : vector<2x28xf32>, vector<28x128xf32>, vector<2x128xf32> -> vector<2x128xf32>
    %cst_32 = arith.constant 0.000000e+00 : f32
    %80 = vector.broadcast %cst_32 : f32 to vector<1x96xf32>
    %81 = tpu.concatenate %47, %80 in 1 : vector<1x32xf32>, vector<1x96xf32> -> vector<1x128xf32>
    %c0_33 = arith.constant 0 : index
    %c0_34 = arith.constant 0 : index
    %82 = vector.load %arg3[%c0_33, %c0_34] : memref<5x256xf32, #tpu.memory_space<vmem>>, vector<2x256xf32>
    tpu.vector_store %arg3[%c0_33, %c0_34], %77 {strides = array<i32>} : memref<5x256xf32, #tpu.memory_space<vmem>>, vector<2x256xf32>,
    %c2 = arith.constant 2 : index
    %c0_35 = arith.constant 0 : index
    %83 = vector.load %arg3[%c2, %c0_35] : memref<5x256xf32, #tpu.memory_space<vmem>>, vector<2x128xf32>
    tpu.vector_store %arg3[%c2, %c0_35], %79 {strides = array<i32>} : memref<5x256xf32, #tpu.memory_space<vmem>>, vector<2x128xf32>,
    %c4 = arith.constant 4 : index
    %c0_36 = arith.constant 0 : index
    %84 = vector.load %arg3[%c4, %c0_36] : memref<5x256xf32, #tpu.memory_space<vmem>>, vector<1x128xf32>
    tpu.vector_store %arg3[%c4, %c0_36], %81 {strides = array<i32>} : memref<5x256xf32, #tpu.memory_space<vmem>>, vector<1x128xf32>,
    return
  }
}

</mosaic_0001>

<llo_original>
// kernel: squeeze.2
$region0: #{squeeze.2}
  %s0 = inlined_call_operand.vmem [shape: f32[64], index: 0, kind: input, shape index: {}]
  %s1 = inlined_call_operand.hbm [shape: f32[8,8], index: 1, kind: output, shape index: {}]
  $region1: #{squeeze.2} parent=0
    #allocation0 [shape = 'u8[4096]{0}', space=vmem, size = 0x1000, scoped, tag = 'operand span for operand 1']
    #allocation1 [shape = 's32[1]{0}', space=sflag, size = 0x4, scoped, tag = 'scoped memory for squeeze.2']
    #allocation2 [shape = 'u8[4096]{0}', space=vmem, size = 0x1000, scoped, tag = 'scoped mem for input reshape']
    %2 = vsyncpa [#allocation1], 0
    %s4 = sshll.u32 1, 1
    %s5 = ssub.s32 %s4, 1
    %v6 = vld [vmem:[%s0] sm:%s5]
    %7 = vst [vmem:[#allocation2] sm:%s5] %v6
    %v8 = vld [vmem:[#allocation2] sm:$0x1]
    %vm9 = vcmask 64512
    %10 = vst.msk [vmem:[#allocation0] sm:$0x1] %vm9, %v8
    %v11 = vld [vmem:[#allocation2] sm:$0x1]
    %12 = vrot.lane.b32.xlu0 %v11, 120
    %v13 = vpop.permute.xlu0 %12
    %vm14 = vcmask 64512
    %s15 = scalar_lea.vmem [#allocation0], 1
    %16 = vst.msk [vmem:[%s15] sm:$0x1] %vm14, %v13
    %v17 = vld [vmem:[#allocation2] sm:$0x1]
    %18 = vrot.lane.b32.xlu0 %v17, 112
    %v19 = vpop.permute.xlu0 %18
    %vm20 = vcmask 64512
    %s21 = scalar_lea.vmem [#allocation0], 2
    %22 = vst.msk [vmem:[%s21] sm:$0x1] %vm20, %v19
    %v23 = vld [vmem:[#allocation2] sm:$0x1]
    %24 = vrot.lane.b32.xlu0 %v23, 104
    %v25 = vpop.permute.xlu0 %24
    %vm26 = vcmask 64512
    %s27 = scalar_lea.vmem [#allocation0], 3
    %28 = vst.msk [vmem:[%s27] sm:$0x1] %vm26, %v25
    %v29 = vld [vmem:[#allocation2] sm:$0x1]
    %30 = vrot.lane.b32.xlu0 %v29, 96
    %v31 = vpop.permute.xlu0 %30
    %vm32 = vcmask 64512
    %s33 = scalar_lea.vmem [#allocation0], 4
    %34 = vst.msk [vmem:[%s33] sm:$0x1] %vm32, %v31
    %v35 = vld [vmem:[#allocation2] sm:$0x1]
    %36 = vrot.lane.b32.xlu0 %v35, 88
    %v37 = vpop.permute.xlu0 %36
    %vm38 = vcmask 64512
    %s39 = scalar_lea.vmem [#allocation0], 5
    %40 = vst.msk [vmem:[%s39] sm:$0x1] %vm38, %v37
    %v41 = vld [vmem:[#allocation2] sm:$0x1]
    %42 = vrot.lane.b32.xlu0 %v41, 80
    %v43 = vpop.permute.xlu0 %42
    %vm44 = vcmask 64512
    %s45 = scalar_lea.vmem [#allocation0], 6
    %46 = vst.msk [vmem:[%s45] sm:$0x1] %vm44, %v43
    %v47 = vld [vmem:[#allocation2] sm:$0x1]
    %48 = vrot.lane.b32.xlu0 %v47, 72
    %v49 = vpop.permute.xlu0 %48
    %vm50 = vcmask 64512
    %s51 = scalar_lea.vmem [#allocation0], 7
    %52 = vst.msk [vmem:[%s51] sm:$0x1] %vm50, %v49
    %s54 = ssub.s32 128, 128
    %55 = vsyncadd [#allocation1], %s54
    %s57 = sshll.u32 [#allocation0], 4
    %s58 = int_to_ptr.vmem [resolvable:$true] %s57
    %60 = dma.vmem_to_hbm [thread:$0]  %s58, 128, %s1, [#allocation1]
    %61 = dma.done [#allocation1], 128
    %62 = vsyncpa [#allocation1], 1

// kernel: model3_forward.1
$region0: #{model3_forward.1}
  #allocation0 [shape = 'u32[]', space=smem, size = 0x4, offset = 0x4, fixed_abs, tag = 'smem constant byte address 0x4 - core index']
  #allocation1 [shape = 'u32[144,128]{1,0:T(1,128)}', space=vmem, size = 0x12000, scoped, tag = 'internal scratch']
  %s0 = inlined_call_operand.vmem [shape: f32[1,120], index: 0, kind: input, shape index: {}]
  %s1 = inlined_call_operand.hbm [shape: f32[352,128], index: 1, kind: input, shape index: {}]
  %s2 = inlined_call_operand.hbm [shape: f32[120,256], index: 2, kind: input, shape index: {}]
  %s3 = inlined_call_operand.vmem [shape: f32[5,256], index: 3, kind: output, shape index: {}]
  %s4 = sld [smem:[#allocation0]]
  $region30: #{model3_forward.1} parent=0
    _
  %s6 = ssub.s32 1, %s4
  %s7 = scalar_select 0, %s6, %s4
  $region1: #{model3_forward.1} parent=0
    #allocation2 [shape = 'u8[180224]{0}', space=vmem, size = 0x2c000, scoped, tag = 'input window, operand 1, single buffered']
    #allocation3 [shape = 's32[1]{0}', space=sflag, size = 0x4, scoped, tag = 'scoped memory for model3_forward.1']
    #allocation4 [shape = 'u8[122880]{0}', space=vmem, size = 0x1e000, scoped, tag = 'input window, operand 2, single buffered']
    #allocation5 [shape = 's32[1]{0}', space=sflag, size = 0x4, scoped, tag = 'scoped memory for model3_forward.1']
    %8 = vsyncpa [#allocation3], 0
    %9 = vsyncpa [#allocation5], 0
    // Predicated region
    $region2: #{model3_forward.1} parent=1 // pred_check
      _
    $region3: #{model3_forward.1} parent=1 // pred_check_branch
      %11 = sbr.rel (0) target = $region5
    $region4: #{model3_forward.1} parent=1 // pred_region
      _
    $region5: #{model3_forward.1} parent=1 // pred_fallthru
      _
    // Predicated region
    $region6: #{model3_forward.1} parent=1 // pred_check
      _
    $region7: #{model3_forward.1} parent=1 // pred_check_branch
      %13 = sbr.rel (0) target = $region9
    $region8: #{model3_forward.1} parent=1 // pred_region
      %s15 = ssub.s32 5632, 5632
      %16 = vsyncadd [#allocation3], %s15
      %s17 = sshll.u32 [#allocation2], 4
      %s18 = int_to_ptr.vmem [resolvable:$true] %s17
      %23 = dma.hbm_to_vmem [thread:$0]  %s1, 5632, %s18, [#allocation3], 128, 128, 8
    $region9: #{model3_forward.1} parent=1 // pred_fallthru
      _
    // Predicated region
    $region10: #{model3_forward.1} parent=1 // pred_check
      _
    $region11: #{model3_forward.1} parent=1 // pred_check_branch
      %25 = sbr.rel (0) target = $region13
    $region12: #{model3_forward.1} parent=1 // pred_region
      %s27 = ssub.s32 3840, 3840
      %28 = vsyncadd [#allocation5], %s27
      %s29 = sshll.u32 [#allocation4], 4
      %s30 = int_to_ptr.vmem [resolvable:$true] %s29
      %35 = dma.hbm_to_vmem [thread:$0]  %s2, 3840, %s30, [#allocation5], 256, 256, 16
    $region13: #{model3_forward.1} parent=1 // pred_fallthru
      _
    // Predicated region
    $region14: #{model3_forward.1} parent=1 // pred_check
      _
    $region15: #{model3_forward.1} parent=1 // pred_check_branch
      %37 = sbr.rel (0) target = $region17
    $region16: #{model3_forward.1} parent=1 // pred_region
      %38 = dma.done [#allocation3], 5632
    $region17: #{model3_forward.1} parent=1 // pred_fallthru
      _
    // Predicated region
    $region18: #{model3_forward.1} parent=1 // pred_check
      _
    $region19: #{model3_forward.1} parent=1 // pred_check_branch
      %40 = sbr.rel (0) target = $region21
    $region20: #{model3_forward.1} parent=1 // pred_region
      %41 = dma.done [#allocation5], 3840
    $region21: #{model3_forward.1} parent=1 // pred_fallthru
      _
    %v42 = vld [vmem:[%s0] sm:$0x1]
    %v43 = vld [vmem:[#allocation2] sm:$0xff]
    %v44 = vld [vmem:[#allocation2 + $0x8] sm:$0xff]
    %v45 = vld [vmem:[#allocation2 + $0x10] sm:$0xff]
    %v46 = vld [vmem:[#allocation2 + $0x18] sm:$0xff]
    %v47 = vld [vmem:[#allocation2 + $0x20] sm:$0xff]
    %v48 = vld [vmem:[#allocation2 + $0x28] sm:$0xff]
    %v49 = vld [vmem:[#allocation2 + $0x30] sm:$0xff]
    %v50 = vld [vmem:[#allocation2 + $0x38] sm:$0xff]
    %v51 = vld [vmem:[#allocation2 + $0x40] sm:$0xff]
    %v52 = vld [vmem:[#allocation2 + $0x48] sm:$0xff]
    %v53 = vld [vmem:[#allocation2 + $0x50] sm:$0xff]
    %v54 = vld [vmem:[#allocation2 + $0x58] sm:$0xff]
    %v55 = vld [vmem:[#allocation2 + $0x60] sm:$0xff]
    %v56 = vld [vmem:[#allocation2 + $0x68] sm:$0xff]
    %v57 = vld [vmem:[#allocation2 + $0x70] sm:$0xff]
    %v58 = vld [vmem:[#allocation2 + $0x78] sm:$0xff]
    %v59 = vld [vmem:[#allocation2 + $0x80] sm:$0xff]
    %v60 = vld [vmem:[#allocation2 + $0x88] sm:$0xff]
    %v61 = vld [vmem:[#allocation2 + $0x90] sm:$0xff]
    %v62 = vld [vmem:[#allocation2 + $0x98] sm:$0xff]
    %v63 = vld [vmem:[#allocation2 + $0xa0] sm:$0xff]
    %v64 = vld [vmem:[#allocation2 + $0xa8] sm:$0xff]
    %v65 = vld [vmem:[#allocation2 + $0xb0] sm:$0xff]
    %v66 = vld [vmem:[#allocation2 + $0xb8] sm:$0xf]
    %v67 = vld [vmem:[#allocation2 + $0xc0] sm:$0xff]
    %v68 = vld [vmem:[#allocation2 + $0xc8] sm:$0xff]
    %v69 = vld [vmem:[#allocation2 + $0xd0] sm:$0xff]
    %v70 = vld [vmem:[#allocation2 + $0xd8] sm:$0xf]
    %v71 = vld [vmem:[#allocation2 + $0xe0] sm:$0xff]
    %v72 = vld [vmem:[#allocation2 + $0xe8] sm:$0xff]
    %v73 = vld [vmem:[#allocation2 + $0xf0] sm:$0xff]
    %v74 = vld [vmem:[#allocation2 + $0xf8] sm:$0xff]
    %v75 = vld [vmem:[#allocation2 + $0x100] sm:$0xff]
    %v76 = vld [vmem:[#allocation2 + $0x108] sm:$0xff]
    %v77 = vld [vmem:[#allocation2 + $0x110] sm:$0xff]
    %v78 = vld [vmem:[#allocation2 + $0x118] sm:$0xf]
    %v79 = vld [vmem:[#allocation2 + $0x120] sm:$0xff]
    %v80 = vld [vmem:[#allocation2 + $0x128] sm:$0xff]
    %v81 = vld [vmem:[#allocation2 + $0x130] sm:$0xff]
    %v82 = vld [vmem:[#allocation2 + $0x138] sm:$0xf]
    %v83 = vld [vmem:[#allocation2 + $0x140] sm:$0xff]
    %v84 = vld [vmem:[#allocation2 + $0x148] sm:$0xff]
    %v85 = vld [vmem:[#allocation2 + $0x150] sm:$0xff]
    %v86 = vld [vmem:[#allocation2 + $0x158] sm:$0xff]
    %v87 = vld [vmem:[#allocation4] sm:$0xff]
    %v88 = vld [vmem:[#allocation4 + $0x8] sm:$0xff]
    %v89 = vld [vmem:[#allocation4 + $0x10] sm:$0xff]
    %v90 = vld [vmem:[#allocation4 + $0x18] sm:$0xff]
    %v91 = vld [vmem:[#allocation4 + $0x20] sm:$0xff]
    %v92 = vld [vmem:[#allocation4 + $0x28] sm:$0xff]
    %v93 = vld [vmem:[#allocation4 + $0x30] sm:$0xff]
    %v94 = vld [vmem:[#allocation4 + $0x38] sm:$0xff]
    %v95 = vld [vmem:[#allocation4 + $0x40] sm:$0xff]
    %v96 = vld [vmem:[#allocation4 + $0x48] sm:$0xff]
    %v97 = vld [vmem:[#allocation4 + $0x50] sm:$0xff]
    %v98 = vld [vmem:[#allocation4 + $0x58] sm:$0xff]
    %v99 = vld [vmem:[#allocation4 + $0x60] sm:$0xff]
    %v100 = vld [vmem:[#allocation4 + $0x68] sm:$0xff]
    %v101 = vld [vmem:[#allocation4 + $0x70] sm:$0xff]
    %v102 = vld [vmem:[#allocation4 + $0x78] sm:$0xff]
    %v103 = vld [vmem:[#allocation4 + $0x80] sm:$0xff]
    %v104 = vld [vmem:[#allocation4 + $0x88] sm:$0xff]
    %v105 = vld [vmem:[#allocation4 + $0x90] sm:$0xff]
    %v106 = vld [vmem:[#allocation4 + $0x98] sm:$0xff]
    %v107 = vld [vmem:[#allocation4 + $0xa0] sm:$0xff]
    %v108 = vld [vmem:[#allocation4 + $0xa8] sm:$0xff]
    %v109 = vld [vmem:[#allocation4 + $0xb0] sm:$0xff]
    %v110 = vld [vmem:[#allocation4 + $0xb8] sm:$0xff]
    %v111 = vld [vmem:[#allocation4 + $0xc0] sm:$0xff]
    %v112 = vld [vmem:[#allocation4 + $0xc8] sm:$0xff]
    %v113 = vld [vmem:[#allocation4 + $0xd0] sm:$0xff]
    %v114 = vld [vmem:[#allocation4 + $0xd8] sm:$0xff]
    %v115 = vld [vmem:[#allocation4 + $0xe0] sm:$0xff]
    %v116 = vld [vmem:[#allocation4 + $0xe8] sm:$0xff]
    %vm117 = vcmask 982016
    %v119 = vsel %vm117, %v42, 0
    %121 = vmatprep.subr.mxu0 0.0
    %122 = vmatpush1.msra.mxu0 0.0
    %123 = vmatprep.subr.mxu0 0.0
    %124 = vmatpush1.msra.mxu0 %v58
    %125 = vmatprep.subr.mxu0 0.0
    %126 = vmatpush1.msra.mxu0 %v57
    %127 = vmatprep.subr.mxu0 0.0
    %128 = vmatpush1.msra.mxu0 %v56
    %129 = vmatprep.subr.mxu0 0.0
    %130 = vmatpush1.msra.mxu0 %v55
    %131 = vmatprep.subr.mxu0 0.0
    %132 = vmatpush1.msra.mxu0 %v54
    %133 = vmatprep.subr.mxu0 0.0
    %134 = vmatpush1.msra.mxu0 %v53
    %135 = vmatprep.subr.mxu0 0.0
    %136 = vmatpush1.msra.mxu0 %v52
    %137 = vmatprep.subr.mxu0 0.0
    %138 = vmatpush1.msra.mxu0 %v51
    %139 = vmatprep.subr.mxu0 0.0
    %140 = vmatpush1.msra.mxu0 %v50
    %141 = vmatprep.subr.mxu0 0.0
    %142 = vmatpush1.msra.mxu0 %v49
    %143 = vmatprep.subr.mxu0 0.0
    %144 = vmatpush1.msra.mxu0 %v48
    %145 = vmatprep.subr.mxu0 0.0
    %146 = vmatpush1.msra.mxu0 %v47
    %147 = vmatprep.subr.mxu0 0.0
    %148 = vmatpush1.msra.mxu0 %v46
    %149 = vmatprep.subr.mxu0 0.0
    %150 = vmatpush1.msra.mxu0 %v45
    %151 = vmatprep.subr.mxu0 0.0
    %152 = vmatpush1.msra.mxu0 %v44
    %153 = vmatprep.subr.mxu0 0.0
    %154 = vmatpush2.msra.mxu0 0.0
    %155 = vmatprep.subr.mxu0 0.0
    %156 = vmatpush2.msra.mxu0 0.0
    %157 = vmatprep.subr.mxu0 0.0
    %158 = vmatpush2.msra.mxu0 0.0
    %159 = vmatprep.subr.mxu0 0.0
    %160 = vmatpush2.msra.mxu0 0.0
    %161 = vmatprep.subr.mxu0 0.0
    %162 = vmatpush2.msra.mxu0 0.0
    %163 = vmatprep.subr.mxu0 0.0
    %164 = vmatpush2.msra.mxu0 0.0
    %165 = vmatprep.subr.mxu0 0.0
    %166 = vmatpush2.msra.mxu0 0.0
    %167 = vmatprep.subr.mxu0 0.0
    %168 = vmatpush2.msra.mxu0 0.0
    %169 = vmatprep.subr.mxu0 0.0
    %170 = vmatpush2.msra.mxu0 0.0
    %171 = vmatprep.subr.mxu0 0.0
    %172 = vmatpush2.msra.mxu0 0.0
    %173 = vmatprep.subr.mxu0 0.0
    %174 = vmatpush2.msra.mxu0 0.0
    %175 = vmatprep.subr.mxu0 0.0
    %176 = vmatpush2.msra.mxu0 0.0
    %177 = vmatprep.subr.mxu0 0.0
    %178 = vmatpush2.msra.mxu0 0.0
    %179 = vmatprep.subr.mxu0 0.0
    %180 = vmatpush2.msra.mxu0 0.0
    %181 = vmatprep.subr.mxu0 0.0
    %182 = vmatpush2.msra.mxu0 0.0
    %183 = vmatprep.subr.mxu0 0.0
    %184 = vmatpush2.msra.mxu0 0.0
    %185 = vmatprep.mubr.f32.mxu0 0.0
    %186 = vmatmul.mubr.f32.gmra.mxu0 %v119
    %v187 = vpop.f32.mrf.mxu0
    %v188 = vadd.f32 %v43, %v187
    %v189 = vpop.f32.mrf.mxu0
    %190 = vdwg.mxu0
    %v191 = vxor.u32 %v188, 2147483648
    %v192 = vmul.f32 %v191, 1.442695
    %v193 = vpow.pop %v192
    %v194 = vadd.f32 %v193, 1.0
    %v195 = vrcp.pop %v194
    %v196 = vmul.f32 1.0, %v195
    %v198 = vrot.slane %v43, 1
    %vm200 = vcmask 261120
    %v202 = vsel %vm200, %v196, 0
    %204 = vmatprep.subr.mxu0 0.0
    %205 = vmatpush1.msra.mxu0 0.0
    %206 = vmatprep.subr.mxu0 0.0
    %207 = vmatpush1.msra.mxu0 0.0
    %208 = vmatprep.subr.mxu0 0.0
    %209 = vmatpush1.msra.mxu0 0.0
    %210 = vmatprep.subr.mxu0 0.0
    %211 = vmatpush1.msra.mxu0 0.0
    %212 = vmatprep.subr.mxu0 0.0
    %213 = vmatpush1.msra.mxu0 0.0
    %214 = vmatprep.subr.mxu0 0.0
    %215 = vmatpush1.msra.mxu0 0.0
    %216 = vmatprep.subr.mxu0 0.0
    %217 = vmatpush1.msra.mxu0 0.0
    %218 = vmatprep.subr.mxu0 0.0
    %219 = vmatpush1.msra.mxu0 0.0
    %220 = vmatprep.subr.mxu0 0.0
    %221 = vmatpush1.msra.mxu0 0.0
    %222 = vmatprep.subr.mxu0 0.0
    %223 = vmatpush1.msra.mxu0 0.0
    %224 = vmatprep.subr.mxu0 0.0
    %225 = vmatpush1.msra.mxu0 0.0
    %226 = vmatprep.subr.mxu0 0.0
    %227 = vmatpush1.msra.mxu0 0.0
    %228 = vmatprep.subr.mxu0 0.0
    %229 = vmatpush1.msra.mxu0 %v62
    %230 = vmatprep.subr.mxu0 0.0
    %231 = vmatpush1.msra.mxu0 %v61
    %232 = vmatprep.subr.mxu0 0.0
    %233 = vmatpush1.msra.mxu0 %v60
    %234 = vmatprep.subr.mxu0 0.0
    %235 = vmatpush1.msra.mxu0 %v59
    %236 = vmatprep.subr.mxu0 0.0
    %237 = vmatpush2.msra.mxu0 0.0
    %238 = vmatprep.subr.mxu0 0.0
    %239 = vmatpush2.msra.mxu0 0.0
    %240 = vmatprep.subr.mxu0 0.0
    %241 = vmatpush2.msra.mxu0 0.0
    %242 = vmatprep.subr.mxu0 0.0
    %243 = vmatpush2.msra.mxu0 0.0
    %244 = vmatprep.subr.mxu0 0.0
    %245 = vmatpush2.msra.mxu0 0.0
    %246 = vmatprep.subr.mxu0 0.0
    %247 = vmatpush2.msra.mxu0 0.0
    %248 = vmatprep.subr.mxu0 0.0
    %249 = vmatpush2.msra.mxu0 0.0
    %250 = vmatprep.subr.mxu0 0.0
    %251 = vmatpush2.msra.mxu0 0.0
    %252 = vmatprep.subr.mxu0 0.0
    %253 = vmatpush2.msra.mxu0 0.0
    %254 = vmatprep.subr.mxu0 0.0
    %255 = vmatpush2.msra.mxu0 0.0
    %256 = vmatprep.subr.mxu0 0.0
    %257 = vmatpush2.msra.mxu0 0.0
    %258 = vmatprep.subr.mxu0 0.0
    %259 = vmatpush2.msra.mxu0 0.0
    %260 = vmatprep.subr.mxu0 0.0
    %261 = vmatpush2.msra.mxu0 0.0
    %262 = vmatprep.subr.mxu0 0.0
    %263 = vmatpush2.msra.mxu0 0.0
    %264 = vmatprep.subr.mxu0 0.0
    %265 = vmatpush2.msra.mxu0 0.0
    %266 = vmatprep.subr.mxu0 0.0
    %267 = vmatpush2.msra.mxu0 0.0
    %268 = vmatprep.mubr.f32.mxu0 0.0
    %269 = vmatmul.mubr.f32.gmra.mxu0 %v202
    %v270 = vpop.f32.mrf.mxu0
    %v271 = vadd.f32 %v198, %v270
    %v272 = vpop.f32.mrf.mxu0
    %273 = vdwg.mxu0
    %v274 = vxor.u32 %v271, 2147483648
    %v275 = vmul.f32 %v274, 1.442695
    %v276 = vpow.pop %v275
    %v277 = vadd.f32 %v276, 1.0
    %v278 = vrcp.pop %v277
    %v279 = vmul.f32 1.0, %v278
    %v280 = vrot.slane %v43, 2
    %vm282 = vcmask 228352
    %v284 = vsel %vm282, %v279, 0
    %vm286 = vcmask 1043456
    %v288 = vsel %vm286, %v66, 0
    %290 = vmatprep.subr.mxu0 0.0
    %291 = vmatpush1.msra.mxu0 0.0
    %292 = vmatprep.subr.mxu0 0.0
    %293 = vmatpush1.msra.mxu0 0.0
    %294 = vmatprep.subr.mxu0 0.0
    %295 = vmatpush1.msra.mxu0 0.0
    %296 = vmatprep.subr.mxu0 0.0
    %297 = vmatpush1.msra.mxu0 0.0
    %298 = vmatprep.subr.mxu0 0.0
    %299 = vmatpush1.msra.mxu0 0.0
    %300 = vmatprep.subr.mxu0 0.0
    %301 = vmatpush1.msra.mxu0 0.0
    %302 = vmatprep.subr.mxu0 0.0
    %303 = vmatpush1.msra.mxu0 0.0
    %304 = vmatprep.subr.mxu0 0.0
    %305 = vmatpush1.msra.mxu0 0.0
    %306 = vmatprep.subr.mxu0 0.0
    %307 = vmatpush1.msra.mxu0 0.0
    %308 = vmatprep.subr.mxu0 0.0
    %309 = vmatpush1.msra.mxu0 0.0
    %310 = vmatprep.subr.mxu0 0.0
    %311 = vmatpush1.msra.mxu0 0.0
    %312 = vmatprep.subr.mxu0 0.0
    %313 = vmatpush1.msra.mxu0 0.0
    %314 = vmatprep.subr.mxu0 0.0
    %315 = vmatpush1.msra.mxu0 %v288
    %316 = vmatprep.subr.mxu0 0.0
    %317 = vmatpush1.msra.mxu0 %v65
    %318 = vmatprep.subr.mxu0 0.0
    %319 = vmatpush1.msra.mxu0 %v64
    %320 = vmatprep.subr.mxu0 0.0
    %321 = vmatpush1.msra.mxu0 %v63
    %322 = vmatprep.subr.mxu0 0.0
    %323 = vmatpush2.msra.mxu0 0.0
    %324 = vmatprep.subr.mxu0 0.0
    %325 = vmatpush2.msra.mxu0 0.0
    %326 = vmatprep.subr.mxu0 0.0
    %327 = vmatpush2.msra.mxu0 0.0
    %328 = vmatprep.subr.mxu0 0.0
    %329 = vmatpush2.msra.mxu0 0.0
    %330 = vmatprep.subr.mxu0 0.0
    %331 = vmatpush2.msra.mxu0 0.0
    %332 = vmatprep.subr.mxu0 0.0
    %333 = vmatpush2.msra.mxu0 0.0
    %334 = vmatprep.subr.mxu0 0.0
    %335 = vmatpush2.msra.mxu0 0.0
    %336 = vmatprep.subr.mxu0 0.0
    %337 = vmatpush2.msra.mxu0 0.0
    %338 = vmatprep.subr.mxu0 0.0
    %339 = vmatpush2.msra.mxu0 0.0
    %340 = vmatprep.subr.mxu0 0.0
    %341 = vmatpush2.msra.mxu0 0.0
    %342 = vmatprep.subr.mxu0 0.0
    %343 = vmatpush2.msra.mxu0 0.0
    %344 = vmatprep.subr.mxu0 0.0
    %345 = vmatpush2.msra.mxu0 0.0
    %346 = vmatprep.subr.mxu0 0.0
    %347 = vmatpush2.msra.mxu0 0.0
    %348 = vmatprep.subr.mxu0 0.0
    %349 = vmatpush2.msra.mxu0 0.0
    %350 = vmatprep.subr.mxu0 0.0
    %351 = vmatpush2.msra.mxu0 0.0
    %352 = vmatprep.subr.mxu0 0.0
    %353 = vmatpush2.msra.mxu0 0.0
    %354 = vmatprep.mubr.f32.mxu0 0.0
    %355 = vmatmul.mubr.f32.gmra.mxu0 %v284
    %v356 = vpop.f32.mrf.mxu0
    %v357 = vadd.f32 %v280, %v356
    %v358 = vpop.f32.mrf.mxu0
    %359 = vdwg.mxu0
    %v360 = vxor.u32 %v357, 2147483648
    %v361 = vmul.f32 %v360, 1.442695
    %v362 = vpow.pop %v361
    %v363 = vadd.f32 %v362, 1.0
    %v364 = vrcp.pop %v363
    %v365 = vmul.f32 1.0, %v364
    %v367 = vsel %vm282, %v365, 0
    %v370 = vsel %vm286, %v70, 0
    %372 = vmatprep.subr.mxu0 0.0
    %373 = vmatpush1.msra.mxu0 0.0
    %374 = vmatprep.subr.mxu0 0.0
    %375 = vmatpush1.msra.mxu0 0.0
    %376 = vmatprep.subr.mxu0 0.0
    %377 = vmatpush1.msra.mxu0 0.0
    %378 = vmatprep.subr.mxu0 0.0
    %379 = vmatpush1.msra.mxu0 0.0
    %380 = vmatprep.subr.mxu0 0.0
    %381 = vmatpush1.msra.mxu0 0.0
    %382 = vmatprep.subr.mxu0 0.0
    %383 = vmatpush1.msra.mxu0 0.0
    %384 = vmatprep.subr.mxu0 0.0
    %385 = vmatpush1.msra.mxu0 0.0
    %386 = vmatprep.subr.mxu0 0.0
    %387 = vmatpush1.msra.mxu0 0.0
    %388 = vmatprep.subr.mxu0 0.0
    %389 = vmatpush1.msra.mxu0 0.0
    %390 = vmatprep.subr.mxu0 0.0
    %391 = vmatpush1.msra.mxu0 0.0
    %392 = vmatprep.subr.mxu0 0.0
    %393 = vmatpush1.msra.mxu0 0.0
    %394 = vmatprep.subr.mxu0 0.0
    %395 = vmatpush1.msra.mxu0 0.0
    %396 = vmatprep.subr.mxu0 0.0
    %397 = vmatpush1.msra.mxu0 %v370
    %398 = vmatprep.subr.mxu0 0.0
    %399 = vmatpush1.msra.mxu0 %v69
    %400 = vmatprep.subr.mxu0 0.0
    %401 = vmatpush1.msra.mxu0 %v68
    %402 = vmatprep.subr.mxu0 0.0
    %403 = vmatpush1.msra.mxu0 %v67
    %404 = vmatprep.subr.mxu0 0.0
    %405 = vmatpush2.msra.mxu0 0.0
    %406 = vmatprep.subr.mxu0 0.0
    %407 = vmatpush2.msra.mxu0 0.0
    %408 = vmatprep.subr.mxu0 0.0
    %409 = vmatpush2.msra.mxu0 0.0
    %410 = vmatprep.subr.mxu0 0.0
    %411 = vmatpush2.msra.mxu0 0.0
    %412 = vmatprep.subr.mxu0 0.0
    %413 = vmatpush2.msra.mxu0 0.0
    %414 = vmatprep.subr.mxu0 0.0
    %415 = vmatpush2.msra.mxu0 0.0
    %416 = vmatprep.subr.mxu0 0.0
    %417 = vmatpush2.msra.mxu0 0.0
    %418 = vmatprep.subr.mxu0 0.0
    %419 = vmatpush2.msra.mxu0 0.0
    %420 = vmatprep.subr.mxu0 0.0
    %421 = vmatpush2.msra.mxu0 0.0
    %422 = vmatprep.subr.mxu0 0.0
    %423 = vmatpush2.msra.mxu0 0.0
    %424 = vmatprep.subr.mxu0 0.0
    %425 = vmatpush2.msra.mxu0 0.0
    %426 = vmatprep.subr.mxu0 0.0
    %427 = vmatpush2.msra.mxu0 0.0
    %428 = vmatprep.subr.mxu0 0.0
    %429 = vmatpush2.msra.mxu0 0.0
    %430 = vmatprep.subr.mxu0 0.0
    %431 = vmatpush2.msra.mxu0 0.0
    %432 = vmatprep.subr.mxu0 0.0
    %433 = vmatpush2.msra.mxu0 0.0
    %434 = vmatprep.subr.mxu0 0.0
    %435 = vmatpush2.msra.mxu0 0.0
    %436 = vmatprep.mubr.f32.mxu0 0.0
    %437 = vmatmul.mubr.f32.gmra.mxu0 %v367
    %v438 = vpop.f32.mrf.mxu0
    %v439 = vadd.f32 0.0, %v438
    %v440 = vpop.f32.mrf.mxu0
    %441 = vdwg.mxu0
    %v443 = vrot.slane %v439, 5
    %v445 = vadd.f32 %v43, %v443
    %v446 = vxor.u32 %v445, 2147483648
    %v447 = vmul.f32 %v446, 1.442695
    %v448 = vpow.pop %v447
    %v449 = vadd.f32 %v448, 1.0
    %v450 = vrcp.pop %v449
    %v451 = vmul.f32 1.0, %v450
    %v453 = vrot.slane %v451, 3
    %v454 = vrot.slane %v43, 4
    %v456 = vsel %vm200, %v453, 0
    %458 = vmatprep.subr.mxu0 0.0
    %459 = vmatpush1.msra.mxu0 0.0
    %460 = vmatprep.subr.mxu0 0.0
    %461 = vmatpush1.msra.mxu0 0.0
    %462 = vmatprep.subr.mxu0 0.0
    %463 = vmatpush1.msra.mxu0 0.0
    %464 = vmatprep.subr.mxu0 0.0
    %465 = vmatpush1.msra.mxu0 0.0
    %466 = vmatprep.subr.mxu0 0.0
    %467 = vmatpush1.msra.mxu0 0.0
    %468 = vmatprep.subr.mxu0 0.0
    %469 = vmatpush1.msra.mxu0 0.0
    %470 = vmatprep.subr.mxu0 0.0
    %471 = vmatpush1.msra.mxu0 0.0
    %472 = vmatprep.subr.mxu0 0.0
    %473 = vmatpush1.msra.mxu0 0.0
    %474 = vmatprep.subr.mxu0 0.0
    %475 = vmatpush1.msra.mxu0 0.0
    %476 = vmatprep.subr.mxu0 0.0
    %477 = vmatpush1.msra.mxu0 0.0
    %478 = vmatprep.subr.mxu0 0.0
    %479 = vmatpush1.msra.mxu0 0.0
    %480 = vmatprep.subr.mxu0 0.0
    %481 = vmatpush1.msra.mxu0 0.0
    %482 = vmatprep.subr.mxu0 0.0
    %483 = vmatpush1.msra.mxu0 %v74
    %484 = vmatprep.subr.mxu0 0.0
    %485 = vmatpush1.msra.mxu0 %v73
    %486 = vmatprep.subr.mxu0 0.0
    %487 = vmatpush1.msra.mxu0 %v72
    %488 = vmatprep.subr.mxu0 0.0
    %489 = vmatpush1.msra.mxu0 %v71
    %490 = vmatprep.subr.mxu0 0.0
    %491 = vmatpush2.msra.mxu0 0.0
    %492 = vmatprep.subr.mxu0 0.0
    %493 = vmatpush2.msra.mxu0 0.0
    %494 = vmatprep.subr.mxu0 0.0
    %495 = vmatpush2.msra.mxu0 0.0
    %496 = vmatprep.subr.mxu0 0.0
    %497 = vmatpush2.msra.mxu0 0.0
    %498 = vmatprep.subr.mxu0 0.0
    %499 = vmatpush2.msra.mxu0 0.0
    %500 = vmatprep.subr.mxu0 0.0
    %501 = vmatpush2.msra.mxu0 0.0
    %502 = vmatprep.subr.mxu0 0.0
    %503 = vmatpush2.msra.mxu0 0.0
    %504 = vmatprep.subr.mxu0 0.0
    %505 = vmatpush2.msra.mxu0 0.0
    %506 = vmatprep.subr.mxu0 0.0
    %507 = vmatpush2.msra.mxu0 0.0
    %508 = vmatprep.subr.mxu0 0.0
    %509 = vmatpush2.msra.mxu0 0.0
    %510 = vmatprep.subr.mxu0 0.0
    %511 = vmatpush2.msra.mxu0 0.0
    %512 = vmatprep.subr.mxu0 0.0
    %513 = vmatpush2.msra.mxu0 0.0
    %514 = vmatprep.subr.mxu0 0.0
    %515 = vmatpush2.msra.mxu0 0.0
    %516 = vmatprep.subr.mxu0 0.0
    %517 = vmatpush2.msra.mxu0 0.0
    %518 = vmatprep.subr.mxu0 0.0
    %519 = vmatpush2.msra.mxu0 0.0
    %520 = vmatprep.subr.mxu0 0.0
    %521 = vmatpush2.msra.mxu0 0.0
    %522 = vmatprep.mubr.f32.mxu0 0.0
    %523 = vmatmul.mubr.f32.gmra.mxu0 %v456
    %v524 = vpop.f32.mrf.mxu0
    %v525 = vadd.f32 %v454, %v524
    %v526 = vpop.f32.mrf.mxu0
    %527 = vdwg.mxu0
    %v528 = vxor.u32 %v525, 2147483648
    %v529 = vmul.f32 %v528, 1.442695
    %v530 = vpow.pop %v529
    %v531 = vadd.f32 %v530, 1.0
    %v532 = vrcp.pop %v531
    %v533 = vmul.f32 1.0, %v532
    %v534 = vrot.slane %v43, 5
    %535 = vrot.lane.b32.xlu0 %v534, 32
    %v536 = vpop.permute.xlu0 %535
    %v538 = vadd.f32 %v439, %v536
    %vm539 = vcmp.ge.f32.partialorder %v538, 0.0
    %v540 = vmul.f32 %v538, 0.05
    %v541 = vsel %vm539, %v538, %v540
    %543 = vrot.lane.b32.xlu0 %v541, 96
    %v544 = vpop.permute.xlu0 %543
    %v545 = vrot.slane %v43, 6
    %v547 = vsel %vm282, %v544, 0
    %v550 = vsel %vm286, %v82, 0
    %552 = vmatprep.subr.mxu0 0.0
    %553 = vmatpush1.msra.mxu0 0.0
    %554 = vmatprep.subr.mxu0 0.0
    %555 = vmatpush1.msra.mxu0 0.0
    %556 = vmatprep.subr.mxu0 0.0
    %557 = vmatpush1.msra.mxu0 0.0
    %558 = vmatprep.subr.mxu0 0.0
    %559 = vmatpush1.msra.mxu0 0.0
    %560 = vmatprep.subr.mxu0 0.0
    %561 = vmatpush1.msra.mxu0 0.0
    %562 = vmatprep.subr.mxu0 0.0
    %563 = vmatpush1.msra.mxu0 0.0
    %564 = vmatprep.subr.mxu0 0.0
    %565 = vmatpush1.msra.mxu0 0.0
    %566 = vmatprep.subr.mxu0 0.0
    %567 = vmatpush1.msra.mxu0 0.0
    %568 = vmatprep.subr.mxu0 0.0
    %569 = vmatpush1.msra.mxu0 0.0
    %570 = vmatprep.subr.mxu0 0.0
    %571 = vmatpush1.msra.mxu0 0.0
    %572 = vmatprep.subr.mxu0 0.0
    %573 = vmatpush1.msra.mxu0 0.0
    %574 = vmatprep.subr.mxu0 0.0
    %575 = vmatpush1.msra.mxu0 0.0
    %576 = vmatprep.subr.mxu0 0.0
    %577 = vmatpush1.msra.mxu0 %v550
    %578 = vmatprep.subr.mxu0 0.0
    %579 = vmatpush1.msra.mxu0 %v81
    %580 = vmatprep.subr.mxu0 0.0
    %581 = vmatpush1.msra.mxu0 %v80
    %582 = vmatprep.subr.mxu0 0.0
    %583 = vmatpush1.msra.mxu0 %v79
    %584 = vmatprep.subr.mxu0 0.0
    %585 = vmatpush2.msra.mxu0 0.0
    %586 = vmatprep.subr.mxu0 0.0
    %587 = vmatpush2.msra.mxu0 0.0
    %588 = vmatprep.subr.mxu0 0.0
    %589 = vmatpush2.msra.mxu0 0.0
    %590 = vmatprep.subr.mxu0 0.0
    %591 = vmatpush2.msra.mxu0 0.0
    %592 = vmatprep.subr.mxu0 0.0
    %593 = vmatpush2.msra.mxu0 0.0
    %594 = vmatprep.subr.mxu0 0.0
    %595 = vmatpush2.msra.mxu0 0.0
    %596 = vmatprep.subr.mxu0 0.0
    %597 = vmatpush2.msra.mxu0 0.0
    %598 = vmatprep.subr.mxu0 0.0
    %599 = vmatpush2.msra.mxu0 0.0
    %600 = vmatprep.subr.mxu0 0.0
    %601 = vmatpush2.msra.mxu0 0.0
    %602 = vmatprep.subr.mxu0 0.0
    %603 = vmatpush2.msra.mxu0 0.0
    %604 = vmatprep.subr.mxu0 0.0
    %605 = vmatpush2.msra.mxu0 0.0
    %606 = vmatprep.subr.mxu0 0.0
    %607 = vmatpush2.msra.mxu0 0.0
    %608 = vmatprep.subr.mxu0 0.0
    %609 = vmatpush2.msra.mxu0 0.0
    %610 = vmatprep.subr.mxu0 0.0
    %611 = vmatpush2.msra.mxu0 0.0
    %612 = vmatprep.subr.mxu0 0.0
    %613 = vmatpush2.msra.mxu0 0.0
    %614 = vmatprep.subr.mxu0 0.0
    %615 = vmatpush2.msra.mxu0 0.0
    %616 = vmatprep.mubr.f32.mxu0 0.0
    %617 = vmatmul.mubr.f32.gmra.mxu0 %v547
    %v618 = vpop.f32.mrf.mxu0
    %v619 = vadd.f32 %v545, %v618
    %v620 = vpop.f32.mrf.mxu0
    %621 = vdwg.mxu0
    %vm622 = vcmp.ge.f32.partialorder %v619, 0.0
    %v623 = vmul.f32 %v619, 0.05
    %v624 = vsel %vm622, %v619, %v623
    %v625 = vrot.slane %v43, 7
    %v628 = vsel %vm200, %v624, 0
    %630 = vmatprep.subr.mxu0 0.0
    %631 = vmatpush1.msra.mxu0 0.0
    %632 = vmatprep.subr.mxu0 0.0
    %633 = vmatpush1.msra.mxu0 0.0
    %634 = vmatprep.subr.mxu0 0.0
    %635 = vmatpush1.msra.mxu0 0.0
    %636 = vmatprep.subr.mxu0 0.0
    %637 = vmatpush1.msra.mxu0 0.0
    %638 = vmatprep.subr.mxu0 0.0
    %639 = vmatpush1.msra.mxu0 0.0
    %640 = vmatprep.subr.mxu0 0.0
    %641 = vmatpush1.msra.mxu0 0.0
    %642 = vmatprep.subr.mxu0 0.0
    %643 = vmatpush1.msra.mxu0 0.0
    %644 = vmatprep.subr.mxu0 0.0
    %645 = vmatpush1.msra.mxu0 0.0
    %646 = vmatprep.subr.mxu0 0.0
    %647 = vmatpush1.msra.mxu0 0.0
    %648 = vmatprep.subr.mxu0 0.0
    %649 = vmatpush1.msra.mxu0 0.0
    %650 = vmatprep.subr.mxu0 0.0
    %651 = vmatpush1.msra.mxu0 0.0
    %652 = vmatprep.subr.mxu0 0.0
    %653 = vmatpush1.msra.mxu0 0.0
    %654 = vmatprep.subr.mxu0 0.0
    %655 = vmatpush1.msra.mxu0 %v86
    %656 = vmatprep.subr.mxu0 0.0
    %657 = vmatpush1.msra.mxu0 %v85
    %658 = vmatprep.subr.mxu0 0.0
    %659 = vmatpush1.msra.mxu0 %v84
    %660 = vmatprep.subr.mxu0 0.0
    %661 = vmatpush1.msra.mxu0 %v83
    %662 = vmatprep.subr.mxu0 0.0
    %663 = vmatpush2.msra.mxu0 0.0
    %664 = vmatprep.subr.mxu0 0.0
    %665 = vmatpush2.msra.mxu0 0.0
    %666 = vmatprep.subr.mxu0 0.0
    %667 = vmatpush2.msra.mxu0 0.0
    %668 = vmatprep.subr.mxu0 0.0
    %669 = vmatpush2.msra.mxu0 0.0
    %670 = vmatprep.subr.mxu0 0.0
    %671 = vmatpush2.msra.mxu0 0.0
    %672 = vmatprep.subr.mxu0 0.0
    %673 = vmatpush2.msra.mxu0 0.0
    %674 = vmatprep.subr.mxu0 0.0
    %675 = vmatpush2.msra.mxu0 0.0
    %676 = vmatprep.subr.mxu0 0.0
    %677 = vmatpush2.msra.mxu0 0.0
    %678 = vmatprep.subr.mxu0 0.0
    %679 = vmatpush2.msra.mxu0 0.0
    %680 = vmatprep.subr.mxu0 0.0
    %681 = vmatpush2.msra.mxu0 0.0
    %682 = vmatprep.subr.mxu0 0.0
    %683 = vmatpush2.msra.mxu0 0.0
    %684 = vmatprep.subr.mxu0 0.0
    %685 = vmatpush2.msra.mxu0 0.0
    %686 = vmatprep.subr.mxu0 0.0
    %687 = vmatpush2.msra.mxu0 0.0
    %688 = vmatprep.subr.mxu0 0.0
    %689 = vmatpush2.msra.mxu0 0.0
    %690 = vmatprep.subr.mxu0 0.0
    %691 = vmatpush2.msra.mxu0 0.0
    %692 = vmatprep.subr.mxu0 0.0
    %693 = vmatpush2.msra.mxu0 0.0
    %694 = vmatprep.mubr.f32.mxu0 0.0
    %695 = vmatmul.mubr.f32.gmra.mxu0 %v628
    %v696 = vpop.f32.mrf.mxu0
    %v697 = vadd.f32 %v625, %v696
    %v698 = vpop.f32.mrf.mxu0
    %699 = vdwg.mxu0
    %vm700 = vcmp.ge.f32.partialorder %v697, 0.0
    %v701 = vmul.f32 %v697, 0.05
    %v702 = vsel %vm700, %v697, %v701
    %v704 = vrot.slane %v702, 7
    %vm706 = vcmask 1040384
    %v707 = vsel %vm706, %v42, %v704
    %v709 = vsel %vm117, %v707, 0
    %711 = vmatprep.subr.mxu0 0.0
    %712 = vmatpush1.msra.mxu0 0.0
    %713 = vmatprep.subr.mxu0 %v116
    %714 = vmatpush1.msra.mxu0 %v115
    %715 = vmatprep.subr.mxu0 %v114
    %716 = vmatpush1.msra.mxu0 %v113
    %717 = vmatprep.subr.mxu0 %v112
    %718 = vmatpush1.msra.mxu0 %v111
    %719 = vmatprep.subr.mxu0 %v110
    %720 = vmatpush1.msra.mxu0 %v109
    %721 = vmatprep.subr.mxu0 %v108
    %722 = vmatpush1.msra.mxu0 %v107
    %723 = vmatprep.subr.mxu0 %v106
    %724 = vmatpush1.msra.mxu0 %v105
    %725 = vmatprep.subr.mxu0 %v104
    %726 = vmatpush1.msra.mxu0 %v103
    %727 = vmatprep.subr.mxu0 %v102
    %728 = vmatpush1.msra.mxu0 %v101
    %729 = vmatprep.subr.mxu0 %v100
    %730 = vmatpush1.msra.mxu0 %v99
    %731 = vmatprep.subr.mxu0 %v98
    %732 = vmatpush1.msra.mxu0 %v97
    %733 = vmatprep.subr.mxu0 %v96
    %734 = vmatpush1.msra.mxu0 %v95
    %735 = vmatprep.subr.mxu0 %v94
    %736 = vmatpush1.msra.mxu0 %v93
    %737 = vmatprep.subr.mxu0 %v92
    %738 = vmatpush1.msra.mxu0 %v91
    %739 = vmatprep.subr.mxu0 %v90
    %740 = vmatpush1.msra.mxu0 %v89
    %741 = vmatprep.subr.mxu0 %v88
    %742 = vmatpush1.msra.mxu0 %v87
    %743 = vmatprep.subr.mxu0 0.0
    %744 = vmatpush2.msra.mxu0 0.0
    %745 = vmatprep.subr.mxu0 0.0
    %746 = vmatpush2.msra.mxu0 0.0
    %747 = vmatprep.subr.mxu0 0.0
    %748 = vmatpush2.msra.mxu0 0.0
    %749 = vmatprep.subr.mxu0 0.0
    %750 = vmatpush2.msra.mxu0 0.0
    %751 = vmatprep.subr.mxu0 0.0
    %752 = vmatpush2.msra.mxu0 0.0
    %753 = vmatprep.subr.mxu0 0.0
    %754 = vmatpush2.msra.mxu0 0.0
    %755 = vmatprep.subr.mxu0 0.0
    %756 = vmatpush2.msra.mxu0 0.0
    %757 = vmatprep.subr.mxu0 0.0
    %758 = vmatpush2.msra.mxu0 0.0
    %759 = vmatprep.subr.mxu0 0.0
    %760 = vmatpush2.msra.mxu0 0.0
    %761 = vmatprep.subr.mxu0 0.0
    %762 = vmatpush2.msra.mxu0 0.0
    %763 = vmatprep.subr.mxu0 0.0
    %764 = vmatpush2.msra.mxu0 0.0
    %765 = vmatprep.subr.mxu0 0.0
    %766 = vmatpush2.msra.mxu0 0.0
    %767 = vmatprep.subr.mxu0 0.0
    %768 = vmatpush2.msra.mxu0 0.0
    %769 = vmatprep.subr.mxu0 0.0
    %770 = vmatpush2.msra.mxu0 0.0
    %771 = vmatprep.subr.mxu0 0.0
    %772 = vmatpush2.msra.mxu0 0.0
    %773 = vmatprep.subr.mxu0 0.0
    %774 = vmatpush2.msra.mxu0 0.0
    %775 = vmatprep.mubr.f32.mxu0 0.0
    %776 = vmatmul.mubr.f32.gmra.mxu0 %v709
    %v777 = vpop.f32.mrf.mxu0
    %v778 = vadd.f32 0.0, %v777
    %v779 = vpop.f32.mrf.mxu0
    %v780 = vadd.f32 0.0, %v779
    %781 = vdwg.mxu0
    %v783 = vrot.slane %v533, 7
    %v785 = vsel %vm706, %v365, %v783
    %v787 = vsel %vm282, %v785, 0
    %v790 = vsel %vm286, %v78, 0
    %792 = vmatprep.subr.mxu0 0.0
    %793 = vmatpush1.msra.mxu0 0.0
    %794 = vmatprep.subr.mxu0 0.0
    %795 = vmatpush1.msra.mxu0 0.0
    %796 = vmatprep.subr.mxu0 0.0
    %797 = vmatpush1.msra.mxu0 0.0
    %798 = vmatprep.subr.mxu0 0.0
    %799 = vmatpush1.msra.mxu0 0.0
    %800 = vmatprep.subr.mxu0 0.0
    %801 = vmatpush1.msra.mxu0 0.0
    %802 = vmatprep.subr.mxu0 0.0
    %803 = vmatpush1.msra.mxu0 0.0
    %804 = vmatprep.subr.mxu0 0.0
    %805 = vmatpush1.msra.mxu0 0.0
    %806 = vmatprep.subr.mxu0 0.0
    %807 = vmatpush1.msra.mxu0 0.0
    %808 = vmatprep.subr.mxu0 0.0
    %809 = vmatpush1.msra.mxu0 0.0
    %810 = vmatprep.subr.mxu0 0.0
    %811 = vmatpush1.msra.mxu0 0.0
    %812 = vmatprep.subr.mxu0 0.0
    %813 = vmatpush1.msra.mxu0 0.0
    %814 = vmatprep.subr.mxu0 0.0
    %815 = vmatpush1.msra.mxu0 0.0
    %816 = vmatprep.subr.mxu0 0.0
    %817 = vmatpush1.msra.mxu0 %v790
    %818 = vmatprep.subr.mxu0 0.0
    %819 = vmatpush1.msra.mxu0 %v77
    %820 = vmatprep.subr.mxu0 0.0
    %821 = vmatpush1.msra.mxu0 %v76
    %822 = vmatprep.subr.mxu0 0.0
    %823 = vmatpush1.msra.mxu0 %v75
    %824 = vmatprep.subr.mxu0 0.0
    %825 = vmatpush2.msra.mxu0 0.0
    %826 = vmatprep.subr.mxu0 0.0
    %827 = vmatpush2.msra.mxu0 0.0
    %828 = vmatprep.subr.mxu0 0.0
    %829 = vmatpush2.msra.mxu0 0.0
    %830 = vmatprep.subr.mxu0 0.0
    %831 = vmatpush2.msra.mxu0 0.0
    %832 = vmatprep.subr.mxu0 0.0
    %833 = vmatpush2.msra.mxu0 0.0
    %834 = vmatprep.subr.mxu0 0.0
    %835 = vmatpush2.msra.mxu0 0.0
    %836 = vmatprep.subr.mxu0 0.0
    %837 = vmatpush2.msra.mxu0 0.0
    %838 = vmatprep.subr.mxu0 0.0
    %839 = vmatpush2.msra.mxu0 0.0
    %840 = vmatprep.subr.mxu0 0.0
    %841 = vmatpush2.msra.mxu0 0.0
    %842 = vmatprep.subr.mxu0 0.0
    %843 = vmatpush2.msra.mxu0 0.0
    %844 = vmatprep.subr.mxu0 0.0
    %845 = vmatpush2.msra.mxu0 0.0
    %846 = vmatprep.subr.mxu0 0.0
    %847 = vmatpush2.msra.mxu0 0.0
    %848 = vmatprep.subr.mxu0 0.0
    %849 = vmatpush2.msra.mxu0 0.0
    %850 = vmatprep.subr.mxu0 0.0
    %851 = vmatpush2.msra.mxu0 0.0
    %852 = vmatprep.subr.mxu0 0.0
    %853 = vmatpush2.msra.mxu0 0.0
    %854 = vmatprep.subr.mxu0 0.0
    %855 = vmatpush2.msra.mxu0 0.0
    %856 = vmatprep.mubr.f32.mxu0 0.0
    %857 = vmatmul.mubr.f32.gmra.mxu0 %v787
    %v858 = vpop.f32.mrf.mxu0
    %v859 = vadd.f32 0.0, %v858
    %v860 = vpop.f32.mrf.mxu0
    %861 = vdwg.mxu0
    %v862 = vsel %vm200, %v451, 0.0
    %863 = vst [vmem:[%s3] sm:$0x3] %v778
    %864 = vst [vmem:[%s3 + $0x8] sm:$0x3] %v780
    %v866 = vrot.slane %v859, 6
    %868 = vst [vmem:[%s3] sm:$0xc] %v866
    %v870 = vrot.slane %v862, 3
    %872 = vst [vmem:[%s3 + $0x4] sm:$0x1] %v870
    // Predicated region
    $region22: #{model3_forward.1} parent=1 // pred_check
      _
    $region23: #{model3_forward.1} parent=1 // pred_check_branch
      %874 = sbr.rel (0) target = $region25
    $region24: #{model3_forward.1} parent=1 // pred_region
      _
    $region25: #{model3_forward.1} parent=1 // pred_fallthru
      _
    // Predicated region
    $region26: #{model3_forward.1} parent=1 // pred_check
      _
    $region27: #{model3_forward.1} parent=1 // pred_check_branch
      %876 = sbr.rel (0) target = $region29
    $region28: #{model3_forward.1} parent=1 // pred_region
      _
    $region29: #{model3_forward.1} parent=1 // pred_fallthru
      _
    %877 = vsyncpa [#allocation3], 1
    %878 = vsyncpa [#allocation5], 1

</llo_original>
